<compile_context>
chip_gen: v7x
topology: tpu7x:2x2x1
jax: 0.10.0
libtpu: 0.0.40
codegen_flags: <defaults>
</compile_context>

<pallas_src>
import math

import jax
import jax.numpy as jnp
from jax.experimental import pallas as pl
from jax.experimental.pallas import tpu as pltpu


def _lstm_fc_kernel(x_ref, h0_ref, c0_ref, wih_ref, whh_ref, b_ref,
                    wfc_ref, bfc_ref, out_ref):
    # x_ref:   (T*B, C)   time-major flattened input, row index = t*B + b
    # h0_ref:  (1, H)     learned initial hidden (broadcast over batch)
    # c0_ref:  (1, H)     learned initial cell
    # wih_ref: (C, 4H)    input->gates weights (pre-transposed at init)
    # whh_ref: (H, 4H)    hidden->gates weights (pre-transposed at init)
    # b_ref:   (1, 4H)    b_ih + b_hh (fused at init)
    # wfc_ref: (H, N)     fc weight (pre-transposed at init)
    # bfc_ref: (1, N)
    # out_ref: (B, N)
    B, _ = out_ref.shape
    H = h0_ref.shape[1]
    T = x_ref.shape[0] // B

    # Hoisted input projection: one MXU op over every timestep, kept entirely
    # in vregs (no VMEM scratch round-trip).
    xproj = (
        jnp.dot(x_ref[...], wih_ref[...], preferred_element_type=jnp.float32)
        + b_ref[...]
    )  # (T*B, 4H)

    h = jnp.broadcast_to(h0_ref[...], (B, H))
    c = jnp.broadcast_to(c0_ref[...], (B, H))
    whh = whh_ref[...]

    # T is a compile-time constant: fully unrolled recurrence with static
    # slice offsets everywhere.
    for t in range(T):
        gates = (
            xproj[t * B:(t + 1) * B, :]
            + jnp.dot(h, whh, preferred_element_type=jnp.float32)
        )  # (B, 4H) — PyTorch gate order: i, f, g, o
        sig = jax.nn.sigmoid(gates)   # whole-vreg EUP op
        tnh = jnp.tanh(gates)         # whole-vreg EUP op
        i = sig[:, 0:H]               # offset-0 lane slice: no rotate
        f = sig[:, H:2 * H]           # rotate, parallel with g's (2-3 XLUs)
        g = tnh[:, 2 * H:3 * H]
        o = sig[:, 3 * H:4 * H]       # rotate overlaps tanh(c_new) below
        c = f * c + i * g
        h = o * jnp.tanh(c)

    # Exact-shape store: (B, comp_count).  A single tiny masked store beats an
    # extra per-call XLA slice op.
    out_ref[...] = (
        jnp.dot(h, wfc_ref[...], preferred_element_type=jnp.float32)
        + bfc_ref[...]
    )


def compositional_recognizer_forward(x, params):
    """x: (B, T, C) float32. Returns (B, comp_count) logits."""
    B, T, C = x.shape
    comp_count = params["w_fc_t"].shape[-1]

    # Only per-call prep: time-major flatten of the activations (weights were
    # laid out once in init_params).  Row index of x_tm = t*B + b.
    x_tm = jnp.transpose(x, (1, 0, 2)).reshape(T * B, C)

    vmem = pl.BlockSpec(memory_space=pltpu.MemorySpace.VMEM)

    return pl.pallas_call(
        _lstm_fc_kernel,
        out_shape=jax.ShapeDtypeStruct((B, comp_count), jnp.float32),
        in_specs=[vmem] * 8,
        out_specs=vmem,
    )(
        x_tm,
        params["h0"],
        params["c0"],
        params["w_ih_t"],
        params["w_hh_t"],
        params["b_gates"],
        params["w_fc_t"],
        params["b_fc"],
    )


def init_params(key, class_count, hidden_size):
    comp_count = class_count ** 2 + math.comb(class_count, 2) + class_count
    k = 1.0 / math.sqrt(hidden_size)
    ks = jax.random.split(key, 6)
    # PyTorch LSTM/Linear use U(-k, k); deterministic synthetic init here.
    w_ih = jax.random.uniform(ks[0], (4 * hidden_size, class_count),
                              jnp.float32, -k, k)
    w_hh = jax.random.uniform(ks[1], (4 * hidden_size, hidden_size),
                              jnp.float32, -k, k)
    b_ih = jax.random.uniform(ks[2], (4 * hidden_size,), jnp.float32, -k, k)
    b_hh = jax.random.uniform(ks[3], (4 * hidden_size,), jnp.float32, -k, k)
    w_fc = jax.random.uniform(ks[4], (comp_count, hidden_size),
                              jnp.float32, -k, k)
    b_fc = jax.random.uniform(ks[5], (comp_count,), jnp.float32, -k, k)
    # All constant layout work (transpose, bias fusion) done once here so the
    # per-call wrapper stays at a single XLA op on the activations.
    return {
        # module __init__ sets h0/c0 to zeros (learned params)
        "h0": jnp.zeros((1, hidden_size), jnp.float32),
        "c0": jnp.zeros((1, hidden_size), jnp.float32),
        "w_ih_t": w_ih.T,                                  # (C, 4H)
        "w_hh_t": w_hh.T,                                  # (H, 4H)
        "b_gates": (b_ih + b_hh).reshape(1, -1),           # (1, 4H)
        "w_fc_t": w_fc.T,                                  # (H, comp_count)
        "b_fc": b_fc.reshape(1, -1),                       # (1, comp_count)
    }


def _reference_forward(x, p):
    """Pure-JAX reference for correctness checking."""
    B, T, C = x.shape
    H = p["h0"].shape[-1]
    h = jnp.broadcast_to(p["h0"], (B, H))
    c = jnp.broadcast_to(p["c0"], (B, H))
    for t in range(T):
        gates = x[:, t, :] @ p["w_ih_t"] + h @ p["w_hh_t"] + p["b_gates"]
        i = jax.nn.sigmoid(gates[:, 0:H])
        f = jax.nn.sigmoid(gates[:, H:2 * H])
        g = jnp.tanh(gates[:, 2 * H:3 * H])
        o = jax.nn.sigmoid(gates[:, 3 * H:4 * H])
        c = f * c + i * g
        h = o * jnp.tanh(c)
    return h @ p["w_fc_t"] + p["b_fc"]


if __name__ == "__main__":
    class_count = 4      # -> comp_count = 16 + 6 + 4 = 26
    hidden_size = 32
    B, T = 2, 8

    key = jax.random.PRNGKey(0)
    k_param, k_x = jax.random.split(key)
    params = init_params(k_param, class_count, hidden_size)
    x = jax.random.normal(k_x, (B, T, class_count), jnp.float32)

    out = compositional_recognizer_forward(x, params)
    out = jax.block_until_ready(out)

    ref = _reference_forward(x, params)
    comp_count = class_count ** 2 + math.comb(class_count, 2) + class_count
    assert out.shape == (B, comp_count)
    assert jnp.allclose(out, ref, atol=1e-5, rtol=1e-5), "mismatch vs reference"

    print("KERNEL_OK")
</pallas_src>

<mosaic_0001>
module attributes {stable_mosaic.version = 11 : i64} {
  func.func @_lstm_fc_kernel(%arg0: memref<16x4xf32, #tpu.memory_space<vmem>>, %arg1: memref<1x32xf32, #tpu.memory_space<vmem>>, %arg2: memref<1x32xf32, #tpu.memory_space<vmem>>, %arg3: memref<4x128xf32, #tpu.memory_space<vmem>>, %arg4: memref<32x128xf32, #tpu.memory_space<vmem>>, %arg5: memref<1x128xf32, #tpu.memory_space<vmem>>, %arg6: memref<32x26xf32, #tpu.memory_space<vmem>>, %arg7: memref<1x26xf32, #tpu.memory_space<vmem>>, %arg8: memref<2x26xf32, #tpu.memory_space<vmem>>) attributes {dimension_semantics = [], scalar_prefetch = 0 : i64, scratch_operands = 0 : i64, tpu.core_type = #tpu.core_type<tc>} {
    %c0 = arith.constant 0 : index
    %c0_0 = arith.constant 0 : index
    %0 = vector.load %arg0[%c0, %c0_0] : memref<16x4xf32, #tpu.memory_space<vmem>>, vector<16x4xf32>
    %c0_1 = arith.constant 0 : index
    %c0_2 = arith.constant 0 : index
    %1 = vector.load %arg3[%c0_1, %c0_2] : memref<4x128xf32, #tpu.memory_space<vmem>>, vector<4x128xf32>
    %cst = arith.constant dense<0.000000e+00> : vector<16x128xf32>
    %2 = tpu.matmul %0, %1, %cst {dimension_numbers = #tpu.dot_dimension_numbers<[1], [0], [0], [1], [0, 0, 1, 1], [], []>} : vector<16x4xf32>, vector<4x128xf32>, vector<16x128xf32> -> vector<16x128xf32>
    %c0_3 = arith.constant 0 : index
    %c0_4 = arith.constant 0 : index
    %3 = vector.load %arg5[%c0_3, %c0_4] : memref<1x128xf32, #tpu.memory_space<vmem>>, vector<1x128xf32>
    %4 = vector.broadcast %3 : vector<1x128xf32> to vector<16x128xf32>
    %5 = arith.addf %2, %4 : vector<16x128xf32>
    %c0_5 = arith.constant 0 : index
    %c0_6 = arith.constant 0 : index
    %6 = vector.load %arg1[%c0_5, %c0_6] : memref<1x32xf32, #tpu.memory_space<vmem>>, vector<1x32xf32>
    %7 = vector.shape_cast %6 : vector<1x32xf32> to vector<1x32xf32>
    %8 = vector.broadcast %7 : vector<1x32xf32> to vector<2x32xf32>
    %c0_7 = arith.constant 0 : index
    %c0_8 = arith.constant 0 : index
    %9 = vector.load %arg2[%c0_7, %c0_8] : memref<1x32xf32, #tpu.memory_space<vmem>>, vector<1x32xf32>
    %10 = vector.shape_cast %9 : vector<1x32xf32> to vector<1x32xf32>
    %11 = vector.broadcast %10 : vector<1x32xf32> to vector<2x32xf32>
    %c0_9 = arith.constant 0 : index
    %c0_10 = arith.constant 0 : index
    %12 = vector.load %arg4[%c0_9, %c0_10] : memref<32x128xf32, #tpu.memory_space<vmem>>, vector<32x128xf32>
    %13 = vector.extract_strided_slice %5 {offsets = [0, 0], sizes = [2, 128], strides = [1, 1]} : vector<16x128xf32> to vector<2x128xf32>
    %cst_11 = arith.constant dense<0.000000e+00> : vector<2x128xf32>
    %14 = tpu.matmul %8, %12, %cst_11 {dimension_numbers = #tpu.dot_dimension_numbers<[1], [0], [0], [1], [0, 0, 1, 1], [], []>} : vector<2x32xf32>, vector<32x128xf32>, vector<2x128xf32> -> vector<2x128xf32>
    %15 = arith.addf %13, %14 : vector<2x128xf32>
    %16 = arith.negf %15 : vector<2x128xf32>
    %17 = math.exp %16 : vector<2x128xf32>
    %cst_12 = arith.constant 1.000000e+00 : f32
    %18 = vector.broadcast %cst_12 : f32 to vector<2x128xf32>
    %19 = arith.addf %18, %17 : vector<2x128xf32>
    %20 = arith.divf %18, %19 : vector<2x128xf32>
    %21 = math.tanh %15 : vector<2x128xf32>
    %22 = vector.extract_strided_slice %20 {offsets = [0, 0], sizes = [2, 32], strides = [1, 1]} : vector<2x128xf32> to vector<2x32xf32>
    %23 = vector.extract_strided_slice %20 {offsets = [0, 32], sizes = [2, 32], strides = [1, 1]} : vector<2x128xf32> to vector<2x32xf32>
    %24 = vector.extract_strided_slice %21 {offsets = [0, 64], sizes = [2, 32], strides = [1, 1]} : vector<2x128xf32> to vector<2x32xf32>
    %25 = vector.extract_strided_slice %20 {offsets = [0, 96], sizes = [2, 32], strides = [1, 1]} : vector<2x128xf32> to vector<2x32xf32>
    %26 = arith.mulf %23, %11 : vector<2x32xf32>
    %27 = arith.mulf %22, %24 : vector<2x32xf32>
    %28 = arith.addf %26, %27 : vector<2x32xf32>
    %29 = math.tanh %28 : vector<2x32xf32>
    %30 = arith.mulf %25, %29 : vector<2x32xf32>
    %31 = vector.extract_strided_slice %5 {offsets = [2, 0], sizes = [2, 128], strides = [1, 1]} : vector<16x128xf32> to vector<2x128xf32>
    %cst_13 = arith.constant dense<0.000000e+00> : vector<2x128xf32>
    %32 = tpu.matmul %30, %12, %cst_13 {dimension_numbers = #tpu.dot_dimension_numbers<[1], [0], [0], [1], [0, 0, 1, 1], [], []>} : vector<2x32xf32>, vector<32x128xf32>, vector<2x128xf32> -> vector<2x128xf32>
    %33 = arith.addf %31, %32 : vector<2x128xf32>
    %34 = arith.negf %33 : vector<2x128xf32>
    %35 = math.exp %34 : vector<2x128xf32>
    %cst_14 = arith.constant 1.000000e+00 : f32
    %36 = vector.broadcast %cst_14 : f32 to vector<2x128xf32>
    %37 = arith.addf %36, %35 : vector<2x128xf32>
    %38 = arith.divf %36, %37 : vector<2x128xf32>
    %39 = math.tanh %33 : vector<2x128xf32>
    %40 = vector.extract_strided_slice %38 {offsets = [0, 0], sizes = [2, 32], strides = [1, 1]} : vector<2x128xf32> to vector<2x32xf32>
    %41 = vector.extract_strided_slice %38 {offsets = [0, 32], sizes = [2, 32], strides = [1, 1]} : vector<2x128xf32> to vector<2x32xf32>
    %42 = vector.extract_strided_slice %39 {offsets = [0, 64], sizes = [2, 32], strides = [1, 1]} : vector<2x128xf32> to vector<2x32xf32>
    %43 = vector.extract_strided_slice %38 {offsets = [0, 96], sizes = [2, 32], strides = [1, 1]} : vector<2x128xf32> to vector<2x32xf32>
    %44 = arith.mulf %41, %28 : vector<2x32xf32>
    %45 = arith.mulf %40, %42 : vector<2x32xf32>
    %46 = arith.addf %44, %45 : vector<2x32xf32>
    %47 = math.tanh %46 : vector<2x32xf32>
    %48 = arith.mulf %43, %47 : vector<2x32xf32>
    %49 = vector.extract_strided_slice %5 {offsets = [4, 0], sizes = [2, 128], strides = [1, 1]} : vector<16x128xf32> to vector<2x128xf32>
    %cst_15 = arith.constant dense<0.000000e+00> : vector<2x128xf32>
    %50 = tpu.matmul %48, %12, %cst_15 {dimension_numbers = #tpu.dot_dimension_numbers<[1], [0], [0], [1], [0, 0, 1, 1], [], []>} : vector<2x32xf32>, vector<32x128xf32>, vector<2x128xf32> -> vector<2x128xf32>
    %51 = arith.addf %49, %50 : vector<2x128xf32>
    %52 = arith.negf %51 : vector<2x128xf32>
    %53 = math.exp %52 : vector<2x128xf32>
    %cst_16 = arith.constant 1.000000e+00 : f32
    %54 = vector.broadcast %cst_16 : f32 to vector<2x128xf32>
    %55 = arith.addf %54, %53 : vector<2x128xf32>
    %56 = arith.divf %54, %55 : vector<2x128xf32>
    %57 = math.tanh %51 : vector<2x128xf32>
    %58 = vector.extract_strided_slice %56 {offsets = [0, 0], sizes = [2, 32], strides = [1, 1]} : vector<2x128xf32> to vector<2x32xf32>
    %59 = vector.extract_strided_slice %56 {offsets = [0, 32], sizes = [2, 32], strides = [1, 1]} : vector<2x128xf32> to vector<2x32xf32>
    %60 = vector.extract_strided_slice %57 {offsets = [0, 64], sizes = [2, 32], strides = [1, 1]} : vector<2x128xf32> to vector<2x32xf32>
    %61 = vector.extract_strided_slice %56 {offsets = [0, 96], sizes = [2, 32], strides = [1, 1]} : vector<2x128xf32> to vector<2x32xf32>
    %62 = arith.mulf %59, %46 : vector<2x32xf32>
    %63 = arith.mulf %58, %60 : vector<2x32xf32>
    %64 = arith.addf %62, %63 : vector<2x32xf32>
    %65 = math.tanh %64 : vector<2x32xf32>
    %66 = arith.mulf %61, %65 : vector<2x32xf32>
    %67 = vector.extract_strided_slice %5 {offsets = [6, 0], sizes = [2, 128], strides = [1, 1]} : vector<16x128xf32> to vector<2x128xf32>
    %cst_17 = arith.constant dense<0.000000e+00> : vector<2x128xf32>
    %68 = tpu.matmul %66, %12, %cst_17 {dimension_numbers = #tpu.dot_dimension_numbers<[1], [0], [0], [1], [0, 0, 1, 1], [], []>} : vector<2x32xf32>, vector<32x128xf32>, vector<2x128xf32> -> vector<2x128xf32>
    %69 = arith.addf %67, %68 : vector<2x128xf32>
    %70 = arith.negf %69 : vector<2x128xf32>
    %71 = math.exp %70 : vector<2x128xf32>
    %cst_18 = arith.constant 1.000000e+00 : f32
    %72 = vector.broadcast %cst_18 : f32 to vector<2x128xf32>
    %73 = arith.addf %72, %71 : vector<2x128xf32>
    %74 = arith.divf %72, %73 : vector<2x128xf32>
    %75 = math.tanh %69 : vector<2x128xf32>
    %76 = vector.extract_strided_slice %74 {offsets = [0, 0], sizes = [2, 32], strides = [1, 1]} : vector<2x128xf32> to vector<2x32xf32>
    %77 = vector.extract_strided_slice %74 {offsets = [0, 32], sizes = [2, 32], strides = [1, 1]} : vector<2x128xf32> to vector<2x32xf32>
    %78 = vector.extract_strided_slice %75 {offsets = [0, 64], sizes = [2, 32], strides = [1, 1]} : vector<2x128xf32> to vector<2x32xf32>
    %79 = vector.extract_strided_slice %74 {offsets = [0, 96], sizes = [2, 32], strides = [1, 1]} : vector<2x128xf32> to vector<2x32xf32>
    %80 = arith.mulf %77, %64 : vector<2x32xf32>
    %81 = arith.mulf %76, %78 : vector<2x32xf32>
    %82 = arith.addf %80, %81 : vector<2x32xf32>
    %83 = math.tanh %82 : vector<2x32xf32>
    %84 = arith.mulf %79, %83 : vector<2x32xf32>
    %85 = vector.extract_strided_slice %5 {offsets = [8, 0], sizes = [2, 128], strides = [1, 1]} : vector<16x128xf32> to vector<2x128xf32>
    %cst_19 = arith.constant dense<0.000000e+00> : vector<2x128xf32>
    %86 = tpu.matmul %84, %12, %cst_19 {dimension_numbers = #tpu.dot_dimension_numbers<[1], [0], [0], [1], [0, 0, 1, 1], [], []>} : vector<2x32xf32>, vector<32x128xf32>, vector<2x128xf32> -> vector<2x128xf32>
    %87 = arith.addf %85, %86 : vector<2x128xf32>
    %88 = arith.negf %87 : vector<2x128xf32>
    %89 = math.exp %88 : vector<2x128xf32>
    %cst_20 = arith.constant 1.000000e+00 : f32
    %90 = vector.broadcast %cst_20 : f32 to vector<2x128xf32>
    %91 = arith.addf %90, %89 : vector<2x128xf32>
    %92 = arith.divf %90, %91 : vector<2x128xf32>
    %93 = math.tanh %87 : vector<2x128xf32>
    %94 = vector.extract_strided_slice %92 {offsets = [0, 0], sizes = [2, 32], strides = [1, 1]} : vector<2x128xf32> to vector<2x32xf32>
    %95 = vector.extract_strided_slice %92 {offsets = [0, 32], sizes = [2, 32], strides = [1, 1]} : vector<2x128xf32> to vector<2x32xf32>
    %96 = vector.extract_strided_slice %93 {offsets = [0, 64], sizes = [2, 32], strides = [1, 1]} : vector<2x128xf32> to vector<2x32xf32>
    %97 = vector.extract_strided_slice %92 {offsets = [0, 96], sizes = [2, 32], strides = [1, 1]} : vector<2x128xf32> to vector<2x32xf32>
    %98 = arith.mulf %95, %82 : vector<2x32xf32>
    %99 = arith.mulf %94, %96 : vector<2x32xf32>
    %100 = arith.addf %98, %99 : vector<2x32xf32>
    %101 = math.tanh %100 : vector<2x32xf32>
    %102 = arith.mulf %97, %101 : vector<2x32xf32>
    %103 = vector.extract_strided_slice %5 {offsets = [10, 0], sizes = [2, 128], strides = [1, 1]} : vector<16x128xf32> to vector<2x128xf32>
    %cst_21 = arith.constant dense<0.000000e+00> : vector<2x128xf32>
    %104 = tpu.matmul %102, %12, %cst_21 {dimension_numbers = #tpu.dot_dimension_numbers<[1], [0], [0], [1], [0, 0, 1, 1], [], []>} : vector<2x32xf32>, vector<32x128xf32>, vector<2x128xf32> -> vector<2x128xf32>
    %105 = arith.addf %103, %104 : vector<2x128xf32>
    %106 = arith.negf %105 : vector<2x128xf32>
    %107 = math.exp %106 : vector<2x128xf32>
    %cst_22 = arith.constant 1.000000e+00 : f32
    %108 = vector.broadcast %cst_22 : f32 to vector<2x128xf32>
    %109 = arith.addf %108, %107 : vector<2x128xf32>
    %110 = arith.divf %108, %109 : vector<2x128xf32>
    %111 = math.tanh %105 : vector<2x128xf32>
    %112 = vector.extract_strided_slice %110 {offsets = [0, 0], sizes = [2, 32], strides = [1, 1]} : vector<2x128xf32> to vector<2x32xf32>
    %113 = vector.extract_strided_slice %110 {offsets = [0, 32], sizes = [2, 32], strides = [1, 1]} : vector<2x128xf32> to vector<2x32xf32>
    %114 = vector.extract_strided_slice %111 {offsets = [0, 64], sizes = [2, 32], strides = [1, 1]} : vector<2x128xf32> to vector<2x32xf32>
    %115 = vector.extract_strided_slice %110 {offsets = [0, 96], sizes = [2, 32], strides = [1, 1]} : vector<2x128xf32> to vector<2x32xf32>
    %116 = arith.mulf %113, %100 : vector<2x32xf32>
    %117 = arith.mulf %112, %114 : vector<2x32xf32>
    %118 = arith.addf %116, %117 : vector<2x32xf32>
    %119 = math.tanh %118 : vector<2x32xf32>
    %120 = arith.mulf %115, %119 : vector<2x32xf32>
    %121 = vector.extract_strided_slice %5 {offsets = [12, 0], sizes = [2, 128], strides = [1, 1]} : vector<16x128xf32> to vector<2x128xf32>
    %cst_23 = arith.constant dense<0.000000e+00> : vector<2x128xf32>
    %122 = tpu.matmul %120, %12, %cst_23 {dimension_numbers = #tpu.dot_dimension_numbers<[1], [0], [0], [1], [0, 0, 1, 1], [], []>} : vector<2x32xf32>, vector<32x128xf32>, vector<2x128xf32> -> vector<2x128xf32>
    %123 = arith.addf %121, %122 : vector<2x128xf32>
    %124 = arith.negf %123 : vector<2x128xf32>
    %125 = math.exp %124 : vector<2x128xf32>
    %cst_24 = arith.constant 1.000000e+00 : f32
    %126 = vector.broadcast %cst_24 : f32 to vector<2x128xf32>
    %127 = arith.addf %126, %125 : vector<2x128xf32>
    %128 = arith.divf %126, %127 : vector<2x128xf32>
    %129 = math.tanh %123 : vector<2x128xf32>
    %130 = vector.extract_strided_slice %128 {offsets = [0, 0], sizes = [2, 32], strides = [1, 1]} : vector<2x128xf32> to vector<2x32xf32>
    %131 = vector.extract_strided_slice %128 {offsets = [0, 32], sizes = [2, 32], strides = [1, 1]} : vector<2x128xf32> to vector<2x32xf32>
    %132 = vector.extract_strided_slice %129 {offsets = [0, 64], sizes = [2, 32], strides = [1, 1]} : vector<2x128xf32> to vector<2x32xf32>
    %133 = vector.extract_strided_slice %128 {offsets = [0, 96], sizes = [2, 32], strides = [1, 1]} : vector<2x128xf32> to vector<2x32xf32>
    %134 = arith.mulf %131, %118 : vector<2x32xf32>
    %135 = arith.mulf %130, %132 : vector<2x32xf32>
    %136 = arith.addf %134, %135 : vector<2x32xf32>
    %137 = math.tanh %136 : vector<2x32xf32>
    %138 = arith.mulf %133, %137 : vector<2x32xf32>
    %139 = vector.extract_strided_slice %5 {offsets = [14, 0], sizes = [2, 128], strides = [1, 1]} : vector<16x128xf32> to vector<2x128xf32>
    %cst_25 = arith.constant dense<0.000000e+00> : vector<2x128xf32>
    %140 = tpu.matmul %138, %12, %cst_25 {dimension_numbers = #tpu.dot_dimension_numbers<[1], [0], [0], [1], [0, 0, 1, 1], [], []>} : vector<2x32xf32>, vector<32x128xf32>, vector<2x128xf32> -> vector<2x128xf32>
    %141 = arith.addf %139, %140 : vector<2x128xf32>
    %142 = arith.negf %141 : vector<2x128xf32>
    %143 = math.exp %142 : vector<2x128xf32>
    %cst_26 = arith.constant 1.000000e+00 : f32
    %144 = vector.broadcast %cst_26 : f32 to vector<2x128xf32>
    %145 = arith.addf %144, %143 : vector<2x128xf32>
    %146 = arith.divf %144, %145 : vector<2x128xf32>
    %147 = math.tanh %141 : vector<2x128xf32>
    %148 = vector.extract_strided_slice %146 {offsets = [0, 0], sizes = [2, 32], strides = [1, 1]} : vector<2x128xf32> to vector<2x32xf32>
    %149 = vector.extract_strided_slice %146 {offsets = [0, 32], sizes = [2, 32], strides = [1, 1]} : vector<2x128xf32> to vector<2x32xf32>
    %150 = vector.extract_strided_slice %147 {offsets = [0, 64], sizes = [2, 32], strides = [1, 1]} : vector<2x128xf32> to vector<2x32xf32>
    %151 = vector.extract_strided_slice %146 {offsets = [0, 96], sizes = [2, 32], strides = [1, 1]} : vector<2x128xf32> to vector<2x32xf32>
    %152 = arith.mulf %149, %136 : vector<2x32xf32>
    %153 = arith.mulf %148, %150 : vector<2x32xf32>
    %154 = arith.addf %152, %153 : vector<2x32xf32>
    %155 = math.tanh %154 : vector<2x32xf32>
    %156 = arith.mulf %151, %155 : vector<2x32xf32>
    %c0_27 = arith.constant 0 : index
    %c0_28 = arith.constant 0 : index
    %157 = vector.load %arg6[%c0_27, %c0_28] : memref<32x26xf32, #tpu.memory_space<vmem>>, vector<32x26xf32>
    %cst_29 = arith.constant dense<0.000000e+00> : vector<2x26xf32>
    %158 = tpu.matmul %156, %157, %cst_29 {dimension_numbers = #tpu.dot_dimension_numbers<[1], [0], [0], [1], [0, 0, 1, 1], [], []>} : vector<2x32xf32>, vector<32x26xf32>, vector<2x26xf32> -> vector<2x26xf32>
    %c0_30 = arith.constant 0 : index
    %c0_31 = arith.constant 0 : index
    %159 = vector.load %arg7[%c0_30, %c0_31] : memref<1x26xf32, #tpu.memory_space<vmem>>, vector<1x26xf32>
    %160 = vector.broadcast %159 : vector<1x26xf32> to vector<2x26xf32>
    %161 = arith.addf %158, %160 : vector<2x26xf32>
    %c0_32 = arith.constant 0 : index
    %c0_33 = arith.constant 0 : index
    %162 = vector.load %arg8[%c0_32, %c0_33] : memref<2x26xf32, #tpu.memory_space<vmem>>, vector<2x26xf32>
    tpu.vector_store %arg8[%c0_32, %c0_33], %161 {strides = array<i32>} : memref<2x26xf32, #tpu.memory_space<vmem>>, vector<2x26xf32>,
    return
  }
}

</mosaic_0001>

<llo_original>
// kernel: tpu_custom_call.1
$region0: #{tpu_custom_call.1}
  #allocation0 [shape = 'u32[]', space=smem, size = 0x4, offset = 0x4, fixed_abs, tag = 'smem constant byte address 0x4 - core index']
  #allocation1 [shape = 'u32[144,128]{1,0:T(1,128)}', space=vmem, size = 0x12000, scoped, tag = 'internal scratch']
  %s0 = inlined_call_operand.vmem [shape: f32[16,4], index: 0, kind: input, shape index: {}]
  %s1 = inlined_call_operand.vmem [shape: f32[1,32], index: 1, kind: input, shape index: {}]
  %s2 = inlined_call_operand.vmem [shape: f32[1,32], index: 2, kind: input, shape index: {}]
  %s3 = inlined_call_operand.hbm [shape: f32[4,128], index: 3, kind: input, shape index: {}]
  %s4 = inlined_call_operand.vmem [shape: f32[32,128], index: 4, kind: input, shape index: {}]
  %s5 = inlined_call_operand.vmem [shape: f32[1,128], index: 5, kind: input, shape index: {}]
  %s6 = inlined_call_operand.hbm [shape: f32[32,26], index: 6, kind: input, shape index: {}]
  %s7 = inlined_call_operand.vmem [shape: f32[1,26], index: 7, kind: input, shape index: {}]
  %s8 = inlined_call_operand.hbm [shape: f32[2,26], index: 8, kind: output, shape index: {}]
  %s9 = sld [smem:[#allocation0]]
  $region50: #{tpu_custom_call.1} parent=0
    _
  %s11 = ssub.s32 1, %s9
  %s12 = scalar_select 0, %s11, %s9
  $region1: #{tpu_custom_call.1} parent=0
    #allocation2 [shape = 'u8[2048]{0}', space=vmem, size = 0x800, scoped, tag = 'input window, operand 3, single buffered']
    #allocation3 [shape = 's32[1]{0}', space=sflag, size = 0x4, scoped, tag = 'scoped memory for tpu_custom_call.1']
    #allocation4 [shape = 's32[1]{0}', space=sflag, size = 0x4, scoped, tag = 'scoped memory for tpu_custom_call.1']
    #allocation5 [shape = 'u8[16384]{0}', space=vmem, size = 0x4000, scoped, tag = 'input window, operand 6, single buffered']
    #allocation6 [shape = 's32[1]{0}', space=sflag, size = 0x4, scoped, tag = 'scoped memory for tpu_custom_call.1']
    #allocation7 [shape = 'u8[1024]{0}', space=vmem, size = 0x400, scoped, tag = 'output window, operand 0, single buffered']
    %13 = vsyncpa [#allocation3], 0
    %14 = vsyncpa [#allocation6], 0
    %15 = vsyncpa [#allocation4], 0
    // Predicated region
    $region2: #{tpu_custom_call.1} parent=1 // pred_check
      _
    $region3: #{tpu_custom_call.1} parent=1 // pred_check_branch
      %17 = sbr.rel (0) target = $region5
    $region4: #{tpu_custom_call.1} parent=1 // pred_region
      _
    $region5: #{tpu_custom_call.1} parent=1 // pred_fallthru
      _
    // Predicated region
    $region6: #{tpu_custom_call.1} parent=1 // pred_check
      _
    $region7: #{tpu_custom_call.1} parent=1 // pred_check_branch
      %19 = sbr.rel (0) target = $region9
    $region8: #{tpu_custom_call.1} parent=1 // pred_region
      _
    $region9: #{tpu_custom_call.1} parent=1 // pred_fallthru
      _
    // Predicated region
    $region10: #{tpu_custom_call.1} parent=1 // pred_check
      _
    $region11: #{tpu_custom_call.1} parent=1 // pred_check_branch
      %21 = sbr.rel (0) target = $region13
    $region12: #{tpu_custom_call.1} parent=1 // pred_region
      _
    $region13: #{tpu_custom_call.1} parent=1 // pred_fallthru
      _
    // Predicated region
    $region14: #{tpu_custom_call.1} parent=1 // pred_check
      _
    $region15: #{tpu_custom_call.1} parent=1 // pred_check_branch
      %23 = sbr.rel (0) target = $region17
    $region16: #{tpu_custom_call.1} parent=1 // pred_region
      %s25 = ssub.s32 64, 64
      %26 = vsyncadd [#allocation3], %s25
      %s28 = sshll.u32 [#allocation2], 4
      %s29 = int_to_ptr.vmem [resolvable:$true] %s28
      %31 = dma.hbm_to_vmem [thread:$0]  %s3, 64, %s29, [#allocation3]
    $region17: #{tpu_custom_call.1} parent=1 // pred_fallthru
      _
    // Predicated region
    $region18: #{tpu_custom_call.1} parent=1 // pred_check
      _
    $region19: #{tpu_custom_call.1} parent=1 // pred_check_branch
      %33 = sbr.rel (0) target = $region21
    $region20: #{tpu_custom_call.1} parent=1 // pred_region
      _
    $region21: #{tpu_custom_call.1} parent=1 // pred_fallthru
      _
    // Predicated region
    $region22: #{tpu_custom_call.1} parent=1 // pred_check
      _
    $region23: #{tpu_custom_call.1} parent=1 // pred_check_branch
      %35 = sbr.rel (0) target = $region25
    $region24: #{tpu_custom_call.1} parent=1 // pred_region
      _
    $region25: #{tpu_custom_call.1} parent=1 // pred_fallthru
      _
    // Predicated region
    $region26: #{tpu_custom_call.1} parent=1 // pred_check
      _
    $region27: #{tpu_custom_call.1} parent=1 // pred_check_branch
      %37 = sbr.rel (0) target = $region29
    $region28: #{tpu_custom_call.1} parent=1 // pred_region
      %s39 = ssub.s32 512, 512
      %40 = vsyncadd [#allocation6], %s39
      %s41 = sshll.u32 [#allocation5], 4
      %s42 = int_to_ptr.vmem [resolvable:$true] %s41
      %47 = dma.hbm_to_vmem [thread:$0]  %s6, 512, %s42, [#allocation6], 128, 128, 8
    $region29: #{tpu_custom_call.1} parent=1 // pred_fallthru
      _
    // Predicated region
    $region30: #{tpu_custom_call.1} parent=1 // pred_check
      _
    $region31: #{tpu_custom_call.1} parent=1 // pred_check_branch
      %49 = sbr.rel (0) target = $region33
    $region32: #{tpu_custom_call.1} parent=1 // pred_region
      _
    $region33: #{tpu_custom_call.1} parent=1 // pred_fallthru
      _
    // Predicated region
    $region34: #{tpu_custom_call.1} parent=1 // pred_check
      _
    $region35: #{tpu_custom_call.1} parent=1 // pred_check_branch
      %51 = sbr.rel (0) target = $region37
    $region36: #{tpu_custom_call.1} parent=1 // pred_region
      %52 = dma.done [#allocation3], 64
    $region37: #{tpu_custom_call.1} parent=1 // pred_fallthru
      _
    // Predicated region
    $region38: #{tpu_custom_call.1} parent=1 // pred_check
      _
    $region39: #{tpu_custom_call.1} parent=1 // pred_check_branch
      %54 = sbr.rel (0) target = $region41
    $region40: #{tpu_custom_call.1} parent=1 // pred_region
      %55 = dma.done [#allocation6], 512
    $region41: #{tpu_custom_call.1} parent=1 // pred_fallthru
      _
    %v56 = vld [vmem:[%s0] sm:$0xff]
    %v57 = vld [vmem:[%s0 + $0x8] sm:$0xff]
    %v58 = vld [vmem:[#allocation2] sm:$0xf]
    %v59 = vld [vmem:[%s5] sm:$0x1]
    %v61 = vlaneseq
    %v62 = vshrl.u32 %v61, 7
    %v63 = vsub.s32 0, %v62
    %v64 = vrot.slane %v59, %v63
    %vm66 = vcmask 31744
    %v68 = vsel %vm66, %v56, 0
    %v71 = vsel %vm66, %v57, 0
    %vm73 = vcmask 1043456
    %v75 = vsel %vm73, %v58, 0
    %77 = vmatprep.subr.mxu0 0.0
    %78 = vmatpush1.msra.mxu0 %v75
    %79 = vmatprep.subr.mxu0 0.0
    %80 = vmatpush1.msra.mxu0 0.0
    %81 = vmatprep.subr.mxu0 0.0
    %82 = vmatpush1.msra.mxu0 0.0
    %83 = vmatprep.subr.mxu0 0.0
    %84 = vmatpush1.msra.mxu0 0.0
    %85 = vmatprep.subr.mxu0 0.0
    %86 = vmatpush1.msra.mxu0 0.0
    %87 = vmatprep.subr.mxu0 0.0
    %88 = vmatpush1.msra.mxu0 0.0
    %89 = vmatprep.subr.mxu0 0.0
    %90 = vmatpush1.msra.mxu0 0.0
    %91 = vmatprep.subr.mxu0 0.0
    %92 = vmatpush1.msra.mxu0 0.0
    %93 = vmatprep.subr.mxu0 0.0
    %94 = vmatpush1.msra.mxu0 0.0
    %95 = vmatprep.subr.mxu0 0.0
    %96 = vmatpush1.msra.mxu0 0.0
    %97 = vmatprep.subr.mxu0 0.0
    %98 = vmatpush1.msra.mxu0 0.0
    %99 = vmatprep.subr.mxu0 0.0
    %100 = vmatpush1.msra.mxu0 0.0
    %101 = vmatprep.subr.mxu0 0.0
    %102 = vmatpush1.msra.mxu0 0.0
    %103 = vmatprep.subr.mxu0 0.0
    %104 = vmatpush1.msra.mxu0 0.0
    %105 = vmatprep.subr.mxu0 0.0
    %106 = vmatpush1.msra.mxu0 0.0
    %107 = vmatprep.subr.mxu0 0.0
    %108 = vmatpush1.msra.mxu0 0.0
    %109 = vmatprep.subr.mxu0 0.0
    %110 = vmatpush1.msra.mxu0 0.0
    %111 = vmatprep.subr.mxu0 0.0
    %112 = vmatpush1.msra.mxu0 0.0
    %113 = vmatprep.subr.mxu0 0.0
    %114 = vmatpush1.msra.mxu0 0.0
    %115 = vmatprep.subr.mxu0 0.0
    %116 = vmatpush1.msra.mxu0 0.0
    %117 = vmatprep.subr.mxu0 0.0
    %118 = vmatpush1.msra.mxu0 0.0
    %119 = vmatprep.subr.mxu0 0.0
    %120 = vmatpush1.msra.mxu0 0.0
    %121 = vmatprep.subr.mxu0 0.0
    %122 = vmatpush1.msra.mxu0 0.0
    %123 = vmatprep.subr.mxu0 0.0
    %124 = vmatpush1.msra.mxu0 0.0
    %125 = vmatprep.subr.mxu0 0.0
    %126 = vmatpush1.msra.mxu0 0.0
    %127 = vmatprep.subr.mxu0 0.0
    %128 = vmatpush1.msra.mxu0 0.0
    %129 = vmatprep.subr.mxu0 0.0
    %130 = vmatpush1.msra.mxu0 0.0
    %131 = vmatprep.subr.mxu0 0.0
    %132 = vmatpush1.msra.mxu0 0.0
    %133 = vmatprep.subr.mxu0 0.0
    %134 = vmatpush1.msra.mxu0 0.0
    %135 = vmatprep.subr.mxu0 0.0
    %136 = vmatpush1.msra.mxu0 0.0
    %137 = vmatprep.subr.mxu0 0.0
    %138 = vmatpush1.msra.mxu0 0.0
    %139 = vmatprep.subr.mxu0 0.0
    %140 = vmatpush1.msra.mxu0 0.0
    %141 = vmatprep.mubr.f32.mxu0 0.0
    %142 = vmatmul.mubr.f32.gmra.mrb[0].mxu0 %v68
    %v143 = vpop.f32.mrb[0].mxu0
    %v144 = vadd.f32 %v64, %v143
    %v145 = vpop.f32.mrb[0].mxu0
    %146 = vmatprep.mubr.f32.mxu0 0.0
    %147 = vmatmul.mubr.f32.gmra.mrb[0].mxu0 %v71
    %v148 = vpop.f32.mrb[0].mxu0
    %v149 = vadd.f32 %v64, %v148
    %v150 = vpop.f32.mrb[0].mxu0
    %151 = vdwg.mxu0
    %v152 = vld [vmem:[%s1] sm:$0x1]
    %v154 = vlaneseq
    %v155 = vshrl.u32 %v154, 7
    %v156 = vsub.s32 0, %v155
    %v157 = vrot.slane %v152, %v156
    %v158 = vld [vmem:[%s2] sm:$0x1]
    %v160 = vlaneseq
    %v161 = vshrl.u32 %v160, 7
    %v162 = vsub.s32 0, %v161
    %v163 = vrot.slane %v158, %v162
    %v164 = vld [vmem:[%s4] sm:$0xff]
    %v165 = vld [vmem:[%s4 + $0x8] sm:$0xff]
    %v166 = vld [vmem:[%s4 + $0x10] sm:$0xff]
    %v167 = vld [vmem:[%s4 + $0x18] sm:$0xff]
    %vm168 = vcmask 261120
    %v169 = vsel %vm168, %v157, 0
    %171 = vmatprep.subr.mxu0 0.0
    %172 = vmatpush1.msra.mxu0 %v164
    %173 = vmatprep.subr.mxu0 0.0
    %174 = vmatpush1.msra.mxu0 %v165
    %175 = vmatprep.subr.mxu0 0.0
    %176 = vmatpush1.msra.mxu0 %v166
    %177 = vmatprep.subr.mxu0 0.0
    %178 = vmatpush1.msra.mxu0 %v167
    %179 = vmatprep.subr.mxu0 0.0
    %180 = vmatpush1.msra.mxu0 0.0
    %181 = vmatprep.subr.mxu0 0.0
    %182 = vmatpush1.msra.mxu0 0.0
    %183 = vmatprep.subr.mxu0 0.0
    %184 = vmatpush1.msra.mxu0 0.0
    %185 = vmatprep.subr.mxu0 0.0
    %186 = vmatpush1.msra.mxu0 0.0
    %187 = vmatprep.subr.mxu0 0.0
    %188 = vmatpush1.msra.mxu0 0.0
    %189 = vmatprep.subr.mxu0 0.0
    %190 = vmatpush1.msra.mxu0 0.0
    %191 = vmatprep.subr.mxu0 0.0
    %192 = vmatpush1.msra.mxu0 0.0
    %193 = vmatprep.subr.mxu0 0.0
    %194 = vmatpush1.msra.mxu0 0.0
    %195 = vmatprep.subr.mxu0 0.0
    %196 = vmatpush1.msra.mxu0 0.0
    %197 = vmatprep.subr.mxu0 0.0
    %198 = vmatpush1.msra.mxu0 0.0
    %199 = vmatprep.subr.mxu0 0.0
    %200 = vmatpush1.msra.mxu0 0.0
    %201 = vmatprep.subr.mxu0 0.0
    %202 = vmatpush1.msra.mxu0 0.0
    %203 = vmatprep.subr.mxu0 0.0
    %204 = vmatpush1.msra.mxu0 0.0
    %205 = vmatprep.subr.mxu0 0.0
    %206 = vmatpush1.msra.mxu0 0.0
    %207 = vmatprep.subr.mxu0 0.0
    %208 = vmatpush1.msra.mxu0 0.0
    %209 = vmatprep.subr.mxu0 0.0
    %210 = vmatpush1.msra.mxu0 0.0
    %211 = vmatprep.subr.mxu0 0.0
    %212 = vmatpush1.msra.mxu0 0.0
    %213 = vmatprep.subr.mxu0 0.0
    %214 = vmatpush1.msra.mxu0 0.0
    %215 = vmatprep.subr.mxu0 0.0
    %216 = vmatpush1.msra.mxu0 0.0
    %217 = vmatprep.subr.mxu0 0.0
    %218 = vmatpush1.msra.mxu0 0.0
    %219 = vmatprep.subr.mxu0 0.0
    %220 = vmatpush1.msra.mxu0 0.0
    %221 = vmatprep.subr.mxu0 0.0
    %222 = vmatpush1.msra.mxu0 0.0
    %223 = vmatprep.subr.mxu0 0.0
    %224 = vmatpush1.msra.mxu0 0.0
    %225 = vmatprep.subr.mxu0 0.0
    %226 = vmatpush1.msra.mxu0 0.0
    %227 = vmatprep.subr.mxu0 0.0
    %228 = vmatpush1.msra.mxu0 0.0
    %229 = vmatprep.subr.mxu0 0.0
    %230 = vmatpush1.msra.mxu0 0.0
    %231 = vmatprep.subr.mxu0 0.0
    %232 = vmatpush1.msra.mxu0 0.0
    %233 = vmatprep.subr.mxu0 0.0
    %234 = vmatpush1.msra.mxu0 0.0
    %235 = vmatprep.mubr.f32.mxu0 0.0
    %236 = vmatmul.mubr.f32.gmra.mrb[0].mxu0 %v169
    %v237 = vpop.f32.mrb[0].mxu0
    %v238 = vadd.f32 0.0, %v237
    %v239 = vpop.f32.mrb[0].mxu0
    %240 = vdwg.mxu0
    %v241 = vadd.f32 %v144, %v238
    %v242 = vxor.u32 %v241, 2147483648
    %v243 = vmul.f32 %v242, 1.442695
    %v244 = vpow.pop %v243
    %v245 = vadd.f32 %v244, 1.0
    %v246 = vrcp.pop %v245
    %v247 = vmul.f32 1.0, %v246
    %v248 = vtanh.pop %v241
    %249 = vrot.lane.b32.xlu0 %v163, 32
    %v250 = vpop.permute.xlu0 %249
    %v252 = vmul.f32 %v247, %v250
    %254 = vrot.lane.b32.xlu0 %v248, 64
    %v255 = vpop.permute.xlu0 %254
    %v257 = vmul.f32 %v247, %v255
    %259 = vrot.lane.b32.xlu0 %v257, 32
    %v260 = vpop.permute.xlu0 %259
    %v262 = vadd.f32 %v252, %v260
    %v263 = vtanh.pop %v262
    %265 = vrot.lane.b32.xlu0 %v263, 64
    %v266 = vpop.permute.xlu0 %265
    %v268 = vmul.f32 %v247, %v266
    %270 = vrot.lane.b32.xlu0 %v268, 32
    %v271 = vpop.permute.xlu0 %270
    %v272 = vsel %vm168, %v271, 0
    %274 = vmatprep.subr.mxu0 0.0
    %275 = vmatpush1.msra.mxu0 %v164
    %276 = vmatprep.subr.mxu0 0.0
    %277 = vmatpush1.msra.mxu0 %v165
    %278 = vmatprep.subr.mxu0 0.0
    %279 = vmatpush1.msra.mxu0 %v166
    %280 = vmatprep.subr.mxu0 0.0
    %281 = vmatpush1.msra.mxu0 %v167
    %282 = vmatprep.subr.mxu0 0.0
    %283 = vmatpush1.msra.mxu0 0.0
    %284 = vmatprep.subr.mxu0 0.0
    %285 = vmatpush1.msra.mxu0 0.0
    %286 = vmatprep.subr.mxu0 0.0
    %287 = vmatpush1.msra.mxu0 0.0
    %288 = vmatprep.subr.mxu0 0.0
    %289 = vmatpush1.msra.mxu0 0.0
    %290 = vmatprep.subr.mxu0 0.0
    %291 = vmatpush1.msra.mxu0 0.0
    %292 = vmatprep.subr.mxu0 0.0
    %293 = vmatpush1.msra.mxu0 0.0
    %294 = vmatprep.subr.mxu0 0.0
    %295 = vmatpush1.msra.mxu0 0.0
    %296 = vmatprep.subr.mxu0 0.0
    %297 = vmatpush1.msra.mxu0 0.0
    %298 = vmatprep.subr.mxu0 0.0
    %299 = vmatpush1.msra.mxu0 0.0
    %300 = vmatprep.subr.mxu0 0.0
    %301 = vmatpush1.msra.mxu0 0.0
    %302 = vmatprep.subr.mxu0 0.0
    %303 = vmatpush1.msra.mxu0 0.0
    %304 = vmatprep.subr.mxu0 0.0
    %305 = vmatpush1.msra.mxu0 0.0
    %306 = vmatprep.subr.mxu0 0.0
    %307 = vmatpush1.msra.mxu0 0.0
    %308 = vmatprep.subr.mxu0 0.0
    %309 = vmatpush1.msra.mxu0 0.0
    %310 = vmatprep.subr.mxu0 0.0
    %311 = vmatpush1.msra.mxu0 0.0
    %312 = vmatprep.subr.mxu0 0.0
    %313 = vmatpush1.msra.mxu0 0.0
    %314 = vmatprep.subr.mxu0 0.0
    %315 = vmatpush1.msra.mxu0 0.0
    %316 = vmatprep.subr.mxu0 0.0
    %317 = vmatpush1.msra.mxu0 0.0
    %318 = vmatprep.subr.mxu0 0.0
    %319 = vmatpush1.msra.mxu0 0.0
    %320 = vmatprep.subr.mxu0 0.0
    %321 = vmatpush1.msra.mxu0 0.0
    %322 = vmatprep.subr.mxu0 0.0
    %323 = vmatpush1.msra.mxu0 0.0
    %324 = vmatprep.subr.mxu0 0.0
    %325 = vmatpush1.msra.mxu0 0.0
    %326 = vmatprep.subr.mxu0 0.0
    %327 = vmatpush1.msra.mxu0 0.0
    %328 = vmatprep.subr.mxu0 0.0
    %329 = vmatpush1.msra.mxu0 0.0
    %330 = vmatprep.subr.mxu0 0.0
    %331 = vmatpush1.msra.mxu0 0.0
    %332 = vmatprep.subr.mxu0 0.0
    %333 = vmatpush1.msra.mxu0 0.0
    %334 = vmatprep.subr.mxu0 0.0
    %335 = vmatpush1.msra.mxu0 0.0
    %336 = vmatprep.subr.mxu0 0.0
    %337 = vmatpush1.msra.mxu0 0.0
    %338 = vmatprep.mubr.f32.mxu0 0.0
    %339 = vmatmul.mubr.f32.gmra.mrb[0].mxu0 %v272
    %v340 = vpop.f32.mrb[0].mxu0
    %v341 = vadd.f32 0.0, %v340
    %v342 = vpop.f32.mrb[0].mxu0
    %343 = vdwg.mxu0
    %v345 = vrot.slane %v341, 6
    %v347 = vadd.f32 %v144, %v345
    %v348 = vxor.u32 %v347, 2147483648
    %v349 = vmul.f32 %v348, 1.442695
    %v350 = vpow.pop %v349
    %v351 = vadd.f32 %v350, 1.0
    %v352 = vrcp.pop %v351
    %v353 = vmul.f32 1.0, %v352
    %v354 = vtanh.pop %v347
    %v356 = vrot.slane %v262, 6
    %v358 = vmul.f32 %v353, %v356
    %360 = vrot.lane.b32.xlu0 %v354, 64
    %v361 = vpop.permute.xlu0 %360
    %v363 = vmul.f32 %v353, %v361
    %365 = vrot.lane.b32.xlu0 %v363, 32
    %v366 = vpop.permute.xlu0 %365
    %v368 = vadd.f32 %v358, %v366
    %v369 = vtanh.pop %v368
    %371 = vrot.lane.b32.xlu0 %v369, 64
    %v372 = vpop.permute.xlu0 %371
    %v374 = vmul.f32 %v353, %v372
    %v376 = vrot.slane %v374, 2
    %377 = vrot.lane.b32.xlu0 %v376, 32
    %v378 = vpop.permute.xlu0 %377
    %v379 = vsel %vm168, %v378, 0
    %381 = vmatprep.subr.mxu0 0.0
    %382 = vmatpush1.msra.mxu0 %v164
    %383 = vmatprep.subr.mxu0 0.0
    %384 = vmatpush1.msra.mxu0 %v165
    %385 = vmatprep.subr.mxu0 0.0
    %386 = vmatpush1.msra.mxu0 %v166
    %387 = vmatprep.subr.mxu0 0.0
    %388 = vmatpush1.msra.mxu0 %v167
    %389 = vmatprep.subr.mxu0 0.0
    %390 = vmatpush1.msra.mxu0 0.0
    %391 = vmatprep.subr.mxu0 0.0
    %392 = vmatpush1.msra.mxu0 0.0
    %393 = vmatprep.subr.mxu0 0.0
    %394 = vmatpush1.msra.mxu0 0.0
    %395 = vmatprep.subr.mxu0 0.0
    %396 = vmatpush1.msra.mxu0 0.0
    %397 = vmatprep.subr.mxu0 0.0
    %398 = vmatpush1.msra.mxu0 0.0
    %399 = vmatprep.subr.mxu0 0.0
    %400 = vmatpush1.msra.mxu0 0.0
    %401 = vmatprep.subr.mxu0 0.0
    %402 = vmatpush1.msra.mxu0 0.0
    %403 = vmatprep.subr.mxu0 0.0
    %404 = vmatpush1.msra.mxu0 0.0
    %405 = vmatprep.subr.mxu0 0.0
    %406 = vmatpush1.msra.mxu0 0.0
    %407 = vmatprep.subr.mxu0 0.0
    %408 = vmatpush1.msra.mxu0 0.0
    %409 = vmatprep.subr.mxu0 0.0
    %410 = vmatpush1.msra.mxu0 0.0
    %411 = vmatprep.subr.mxu0 0.0
    %412 = vmatpush1.msra.mxu0 0.0
    %413 = vmatprep.subr.mxu0 0.0
    %414 = vmatpush1.msra.mxu0 0.0
    %415 = vmatprep.subr.mxu0 0.0
    %416 = vmatpush1.msra.mxu0 0.0
    %417 = vmatprep.subr.mxu0 0.0
    %418 = vmatpush1.msra.mxu0 0.0
    %419 = vmatprep.subr.mxu0 0.0
    %420 = vmatpush1.msra.mxu0 0.0
    %421 = vmatprep.subr.mxu0 0.0
    %422 = vmatpush1.msra.mxu0 0.0
    %423 = vmatprep.subr.mxu0 0.0
    %424 = vmatpush1.msra.mxu0 0.0
    %425 = vmatprep.subr.mxu0 0.0
    %426 = vmatpush1.msra.mxu0 0.0
    %427 = vmatprep.subr.mxu0 0.0
    %428 = vmatpush1.msra.mxu0 0.0
    %429 = vmatprep.subr.mxu0 0.0
    %430 = vmatpush1.msra.mxu0 0.0
    %431 = vmatprep.subr.mxu0 0.0
    %432 = vmatpush1.msra.mxu0 0.0
    %433 = vmatprep.subr.mxu0 0.0
    %434 = vmatpush1.msra.mxu0 0.0
    %435 = vmatprep.subr.mxu0 0.0
    %436 = vmatpush1.msra.mxu0 0.0
    %437 = vmatprep.subr.mxu0 0.0
    %438 = vmatpush1.msra.mxu0 0.0
    %439 = vmatprep.subr.mxu0 0.0
    %440 = vmatpush1.msra.mxu0 0.0
    %441 = vmatprep.subr.mxu0 0.0
    %442 = vmatpush1.msra.mxu0 0.0
    %443 = vmatprep.subr.mxu0 0.0
    %444 = vmatpush1.msra.mxu0 0.0
    %445 = vmatprep.mubr.f32.mxu0 0.0
    %446 = vmatmul.mubr.f32.gmra.mrb[0].mxu0 %v379
    %v447 = vpop.f32.mrb[0].mxu0
    %v448 = vadd.f32 0.0, %v447
    %v449 = vpop.f32.mrb[0].mxu0
    %450 = vdwg.mxu0
    %v452 = vrot.slane %v448, 4
    %v454 = vadd.f32 %v144, %v452
    %v455 = vxor.u32 %v454, 2147483648
    %v456 = vmul.f32 %v455, 1.442695
    %v457 = vpow.pop %v456
    %v458 = vadd.f32 %v457, 1.0
    %v459 = vrcp.pop %v458
    %v460 = vmul.f32 1.0, %v459
    %v461 = vtanh.pop %v454
    %v463 = vrot.slane %v368, 6
    %v465 = vmul.f32 %v460, %v463
    %467 = vrot.lane.b32.xlu0 %v461, 64
    %v468 = vpop.permute.xlu0 %467
    %v470 = vmul.f32 %v460, %v468
    %472 = vrot.lane.b32.xlu0 %v470, 32
    %v473 = vpop.permute.xlu0 %472
    %v475 = vadd.f32 %v465, %v473
    %v476 = vtanh.pop %v475
    %478 = vrot.lane.b32.xlu0 %v476, 64
    %v479 = vpop.permute.xlu0 %478
    %v481 = vmul.f32 %v460, %v479
    %v483 = vrot.slane %v481, 4
    %484 = vrot.lane.b32.xlu0 %v483, 32
    %v485 = vpop.permute.xlu0 %484
    %v486 = vsel %vm168, %v485, 0
    %488 = vmatprep.subr.mxu0 0.0
    %489 = vmatpush1.msra.mxu0 %v164
    %490 = vmatprep.subr.mxu0 0.0
    %491 = vmatpush1.msra.mxu0 %v165
    %492 = vmatprep.subr.mxu0 0.0
    %493 = vmatpush1.msra.mxu0 %v166
    %494 = vmatprep.subr.mxu0 0.0
    %495 = vmatpush1.msra.mxu0 %v167
    %496 = vmatprep.subr.mxu0 0.0
    %497 = vmatpush1.msra.mxu0 0.0
    %498 = vmatprep.subr.mxu0 0.0
    %499 = vmatpush1.msra.mxu0 0.0
    %500 = vmatprep.subr.mxu0 0.0
    %501 = vmatpush1.msra.mxu0 0.0
    %502 = vmatprep.subr.mxu0 0.0
    %503 = vmatpush1.msra.mxu0 0.0
    %504 = vmatprep.subr.mxu0 0.0
    %505 = vmatpush1.msra.mxu0 0.0
    %506 = vmatprep.subr.mxu0 0.0
    %507 = vmatpush1.msra.mxu0 0.0
    %508 = vmatprep.subr.mxu0 0.0
    %509 = vmatpush1.msra.mxu0 0.0
    %510 = vmatprep.subr.mxu0 0.0
    %511 = vmatpush1.msra.mxu0 0.0
    %512 = vmatprep.subr.mxu0 0.0
    %513 = vmatpush1.msra.mxu0 0.0
    %514 = vmatprep.subr.mxu0 0.0
    %515 = vmatpush1.msra.mxu0 0.0
    %516 = vmatprep.subr.mxu0 0.0
    %517 = vmatpush1.msra.mxu0 0.0
    %518 = vmatprep.subr.mxu0 0.0
    %519 = vmatpush1.msra.mxu0 0.0
    %520 = vmatprep.subr.mxu0 0.0
    %521 = vmatpush1.msra.mxu0 0.0
    %522 = vmatprep.subr.mxu0 0.0
    %523 = vmatpush1.msra.mxu0 0.0
    %524 = vmatprep.subr.mxu0 0.0
    %525 = vmatpush1.msra.mxu0 0.0
    %526 = vmatprep.subr.mxu0 0.0
    %527 = vmatpush1.msra.mxu0 0.0
    %528 = vmatprep.subr.mxu0 0.0
    %529 = vmatpush1.msra.mxu0 0.0
    %530 = vmatprep.subr.mxu0 0.0
    %531 = vmatpush1.msra.mxu0 0.0
    %532 = vmatprep.subr.mxu0 0.0
    %533 = vmatpush1.msra.mxu0 0.0
    %534 = vmatprep.subr.mxu0 0.0
    %535 = vmatpush1.msra.mxu0 0.0
    %536 = vmatprep.subr.mxu0 0.0
    %537 = vmatpush1.msra.mxu0 0.0
    %538 = vmatprep.subr.mxu0 0.0
    %539 = vmatpush1.msra.mxu0 0.0
    %540 = vmatprep.subr.mxu0 0.0
    %541 = vmatpush1.msra.mxu0 0.0
    %542 = vmatprep.subr.mxu0 0.0
    %543 = vmatpush1.msra.mxu0 0.0
    %544 = vmatprep.subr.mxu0 0.0
    %545 = vmatpush1.msra.mxu0 0.0
    %546 = vmatprep.subr.mxu0 0.0
    %547 = vmatpush1.msra.mxu0 0.0
    %548 = vmatprep.subr.mxu0 0.0
    %549 = vmatpush1.msra.mxu0 0.0
    %550 = vmatprep.subr.mxu0 0.0
    %551 = vmatpush1.msra.mxu0 0.0
    %552 = vmatprep.mubr.f32.mxu0 0.0
    %553 = vmatmul.mubr.f32.gmra.mrb[0].mxu0 %v486
    %v554 = vpop.f32.mrb[0].mxu0
    %v555 = vadd.f32 0.0, %v554
    %v556 = vpop.f32.mrb[0].mxu0
    %557 = vdwg.mxu0
    %v559 = vrot.slane %v555, 2
    %v561 = vadd.f32 %v144, %v559
    %v562 = vxor.u32 %v561, 2147483648
    %v563 = vmul.f32 %v562, 1.442695
    %v564 = vpow.pop %v563
    %v565 = vadd.f32 %v564, 1.0
    %v566 = vrcp.pop %v565
    %v567 = vmul.f32 1.0, %v566
    %v568 = vtanh.pop %v561
    %v570 = vrot.slane %v475, 6
    %v572 = vmul.f32 %v567, %v570
    %574 = vrot.lane.b32.xlu0 %v568, 64
    %v575 = vpop.permute.xlu0 %574
    %v577 = vmul.f32 %v567, %v575
    %579 = vrot.lane.b32.xlu0 %v577, 32
    %v580 = vpop.permute.xlu0 %579
    %v582 = vadd.f32 %v572, %v580
    %v583 = vtanh.pop %v582
    %585 = vrot.lane.b32.xlu0 %v583, 64
    %v586 = vpop.permute.xlu0 %585
    %v588 = vmul.f32 %v567, %v586
    %v590 = vrot.slane %v588, 6
    %591 = vrot.lane.b32.xlu0 %v590, 32
    %v592 = vpop.permute.xlu0 %591
    %v593 = vsel %vm168, %v592, 0
    %595 = vmatprep.subr.mxu0 0.0
    %596 = vmatpush1.msra.mxu0 %v164
    %597 = vmatprep.subr.mxu0 0.0
    %598 = vmatpush1.msra.mxu0 %v165
    %599 = vmatprep.subr.mxu0 0.0
    %600 = vmatpush1.msra.mxu0 %v166
    %601 = vmatprep.subr.mxu0 0.0
    %602 = vmatpush1.msra.mxu0 %v167
    %603 = vmatprep.subr.mxu0 0.0
    %604 = vmatpush1.msra.mxu0 0.0
    %605 = vmatprep.subr.mxu0 0.0
    %606 = vmatpush1.msra.mxu0 0.0
    %607 = vmatprep.subr.mxu0 0.0
    %608 = vmatpush1.msra.mxu0 0.0
    %609 = vmatprep.subr.mxu0 0.0
    %610 = vmatpush1.msra.mxu0 0.0
    %611 = vmatprep.subr.mxu0 0.0
    %612 = vmatpush1.msra.mxu0 0.0
    %613 = vmatprep.subr.mxu0 0.0
    %614 = vmatpush1.msra.mxu0 0.0
    %615 = vmatprep.subr.mxu0 0.0
    %616 = vmatpush1.msra.mxu0 0.0
    %617 = vmatprep.subr.mxu0 0.0
    %618 = vmatpush1.msra.mxu0 0.0
    %619 = vmatprep.subr.mxu0 0.0
    %620 = vmatpush1.msra.mxu0 0.0
    %621 = vmatprep.subr.mxu0 0.0
    %622 = vmatpush1.msra.mxu0 0.0
    %623 = vmatprep.subr.mxu0 0.0
    %624 = vmatpush1.msra.mxu0 0.0
    %625 = vmatprep.subr.mxu0 0.0
    %626 = vmatpush1.msra.mxu0 0.0
    %627 = vmatprep.subr.mxu0 0.0
    %628 = vmatpush1.msra.mxu0 0.0
    %629 = vmatprep.subr.mxu0 0.0
    %630 = vmatpush1.msra.mxu0 0.0
    %631 = vmatprep.subr.mxu0 0.0
    %632 = vmatpush1.msra.mxu0 0.0
    %633 = vmatprep.subr.mxu0 0.0
    %634 = vmatpush1.msra.mxu0 0.0
    %635 = vmatprep.subr.mxu0 0.0
    %636 = vmatpush1.msra.mxu0 0.0
    %637 = vmatprep.subr.mxu0 0.0
    %638 = vmatpush1.msra.mxu0 0.0
    %639 = vmatprep.subr.mxu0 0.0
    %640 = vmatpush1.msra.mxu0 0.0
    %641 = vmatprep.subr.mxu0 0.0
    %642 = vmatpush1.msra.mxu0 0.0
    %643 = vmatprep.subr.mxu0 0.0
    %644 = vmatpush1.msra.mxu0 0.0
    %645 = vmatprep.subr.mxu0 0.0
    %646 = vmatpush1.msra.mxu0 0.0
    %647 = vmatprep.subr.mxu0 0.0
    %648 = vmatpush1.msra.mxu0 0.0
    %649 = vmatprep.subr.mxu0 0.0
    %650 = vmatpush1.msra.mxu0 0.0
    %651 = vmatprep.subr.mxu0 0.0
    %652 = vmatpush1.msra.mxu0 0.0
    %653 = vmatprep.subr.mxu0 0.0
    %654 = vmatpush1.msra.mxu0 0.0
    %655 = vmatprep.subr.mxu0 0.0
    %656 = vmatpush1.msra.mxu0 0.0
    %657 = vmatprep.subr.mxu0 0.0
    %658 = vmatpush1.msra.mxu0 0.0
    %659 = vmatprep.mubr.f32.mxu0 0.0
    %660 = vmatmul.mubr.f32.gmra.mrb[0].mxu0 %v593
    %v661 = vpop.f32.mrb[0].mxu0
    %v662 = vadd.f32 0.0, %v661
    %v663 = vpop.f32.mrb[0].mxu0
    %664 = vdwg.mxu0
    %v665 = vadd.f32 %v149, %v662
    %v666 = vxor.u32 %v665, 2147483648
    %v667 = vmul.f32 %v666, 1.442695
    %v668 = vpow.pop %v667
    %v669 = vadd.f32 %v668, 1.0
    %v670 = vrcp.pop %v669
    %v671 = vmul.f32 1.0, %v670
    %v672 = vtanh.pop %v665
    %v674 = vrot.slane %v582, 6
    %v676 = vmul.f32 %v671, %v674
    %678 = vrot.lane.b32.xlu0 %v672, 64
    %v679 = vpop.permute.xlu0 %678
    %v681 = vmul.f32 %v671, %v679
    %683 = vrot.lane.b32.xlu0 %v681, 32
    %v684 = vpop.permute.xlu0 %683
    %v686 = vadd.f32 %v676, %v684
    %v687 = vtanh.pop %v686
    %689 = vrot.lane.b32.xlu0 %v687, 64
    %v690 = vpop.permute.xlu0 %689
    %v692 = vmul.f32 %v671, %v690
    %694 = vrot.lane.b32.xlu0 %v692, 32
    %v695 = vpop.permute.xlu0 %694
    %v696 = vsel %vm168, %v695, 0
    %698 = vmatprep.subr.mxu0 0.0
    %699 = vmatpush1.msra.mxu0 %v164
    %700 = vmatprep.subr.mxu0 0.0
    %701 = vmatpush1.msra.mxu0 %v165
    %702 = vmatprep.subr.mxu0 0.0
    %703 = vmatpush1.msra.mxu0 %v166
    %704 = vmatprep.subr.mxu0 0.0
    %705 = vmatpush1.msra.mxu0 %v167
    %706 = vmatprep.subr.mxu0 0.0
    %707 = vmatpush1.msra.mxu0 0.0
    %708 = vmatprep.subr.mxu0 0.0
    %709 = vmatpush1.msra.mxu0 0.0
    %710 = vmatprep.subr.mxu0 0.0
    %711 = vmatpush1.msra.mxu0 0.0
    %712 = vmatprep.subr.mxu0 0.0
    %713 = vmatpush1.msra.mxu0 0.0
    %714 = vmatprep.subr.mxu0 0.0
    %715 = vmatpush1.msra.mxu0 0.0
    %716 = vmatprep.subr.mxu0 0.0
    %717 = vmatpush1.msra.mxu0 0.0
    %718 = vmatprep.subr.mxu0 0.0
    %719 = vmatpush1.msra.mxu0 0.0
    %720 = vmatprep.subr.mxu0 0.0
    %721 = vmatpush1.msra.mxu0 0.0
    %722 = vmatprep.subr.mxu0 0.0
    %723 = vmatpush1.msra.mxu0 0.0
    %724 = vmatprep.subr.mxu0 0.0
    %725 = vmatpush1.msra.mxu0 0.0
    %726 = vmatprep.subr.mxu0 0.0
    %727 = vmatpush1.msra.mxu0 0.0
    %728 = vmatprep.subr.mxu0 0.0
    %729 = vmatpush1.msra.mxu0 0.0
    %730 = vmatprep.subr.mxu0 0.0
    %731 = vmatpush1.msra.mxu0 0.0
    %732 = vmatprep.subr.mxu0 0.0
    %733 = vmatpush1.msra.mxu0 0.0
    %734 = vmatprep.subr.mxu0 0.0
    %735 = vmatpush1.msra.mxu0 0.0
    %736 = vmatprep.subr.mxu0 0.0
    %737 = vmatpush1.msra.mxu0 0.0
    %738 = vmatprep.subr.mxu0 0.0
    %739 = vmatpush1.msra.mxu0 0.0
    %740 = vmatprep.subr.mxu0 0.0
    %741 = vmatpush1.msra.mxu0 0.0
    %742 = vmatprep.subr.mxu0 0.0
    %743 = vmatpush1.msra.mxu0 0.0
    %744 = vmatprep.subr.mxu0 0.0
    %745 = vmatpush1.msra.mxu0 0.0
    %746 = vmatprep.subr.mxu0 0.0
    %747 = vmatpush1.msra.mxu0 0.0
    %748 = vmatprep.subr.mxu0 0.0
    %749 = vmatpush1.msra.mxu0 0.0
    %750 = vmatprep.subr.mxu0 0.0
    %751 = vmatpush1.msra.mxu0 0.0
    %752 = vmatprep.subr.mxu0 0.0
    %753 = vmatpush1.msra.mxu0 0.0
    %754 = vmatprep.subr.mxu0 0.0
    %755 = vmatpush1.msra.mxu0 0.0
    %756 = vmatprep.subr.mxu0 0.0
    %757 = vmatpush1.msra.mxu0 0.0
    %758 = vmatprep.subr.mxu0 0.0
    %759 = vmatpush1.msra.mxu0 0.0
    %760 = vmatprep.subr.mxu0 0.0
    %761 = vmatpush1.msra.mxu0 0.0
    %762 = vmatprep.mubr.f32.mxu0 0.0
    %763 = vmatmul.mubr.f32.gmra.mrb[0].mxu0 %v696
    %v764 = vpop.f32.mrb[0].mxu0
    %v765 = vadd.f32 0.0, %v764
    %v766 = vpop.f32.mrb[0].mxu0
    %767 = vdwg.mxu0
    %v769 = vrot.slane %v765, 6
    %v771 = vadd.f32 %v149, %v769
    %v772 = vxor.u32 %v771, 2147483648
    %v773 = vmul.f32 %v772, 1.442695
    %v774 = vpow.pop %v773
    %v775 = vadd.f32 %v774, 1.0
    %v776 = vrcp.pop %v775
    %v777 = vmul.f32 1.0, %v776
    %v778 = vtanh.pop %v771
    %v780 = vrot.slane %v686, 6
    %v782 = vmul.f32 %v777, %v780
    %784 = vrot.lane.b32.xlu0 %v778, 64
    %v785 = vpop.permute.xlu0 %784
    %v787 = vmul.f32 %v777, %v785
    %789 = vrot.lane.b32.xlu0 %v787, 32
    %v790 = vpop.permute.xlu0 %789
    %v792 = vadd.f32 %v782, %v790
    %v793 = vtanh.pop %v792
    %795 = vrot.lane.b32.xlu0 %v793, 64
    %v796 = vpop.permute.xlu0 %795
    %v798 = vmul.f32 %v777, %v796
    %v800 = vrot.slane %v798, 2
    %801 = vrot.lane.b32.xlu0 %v800, 32
    %v802 = vpop.permute.xlu0 %801
    %v803 = vsel %vm168, %v802, 0
    %805 = vmatprep.subr.mxu0 0.0
    %806 = vmatpush1.msra.mxu0 %v164
    %807 = vmatprep.subr.mxu0 0.0
    %808 = vmatpush1.msra.mxu0 %v165
    %809 = vmatprep.subr.mxu0 0.0
    %810 = vmatpush1.msra.mxu0 %v166
    %811 = vmatprep.subr.mxu0 0.0
    %812 = vmatpush1.msra.mxu0 %v167
    %813 = vmatprep.subr.mxu0 0.0
    %814 = vmatpush1.msra.mxu0 0.0
    %815 = vmatprep.subr.mxu0 0.0
    %816 = vmatpush1.msra.mxu0 0.0
    %817 = vmatprep.subr.mxu0 0.0
    %818 = vmatpush1.msra.mxu0 0.0
    %819 = vmatprep.subr.mxu0 0.0
    %820 = vmatpush1.msra.mxu0 0.0
    %821 = vmatprep.subr.mxu0 0.0
    %822 = vmatpush1.msra.mxu0 0.0
    %823 = vmatprep.subr.mxu0 0.0
    %824 = vmatpush1.msra.mxu0 0.0
    %825 = vmatprep.subr.mxu0 0.0
    %826 = vmatpush1.msra.mxu0 0.0
    %827 = vmatprep.subr.mxu0 0.0
    %828 = vmatpush1.msra.mxu0 0.0
    %829 = vmatprep.subr.mxu0 0.0
    %830 = vmatpush1.msra.mxu0 0.0
    %831 = vmatprep.subr.mxu0 0.0
    %832 = vmatpush1.msra.mxu0 0.0
    %833 = vmatprep.subr.mxu0 0.0
    %834 = vmatpush1.msra.mxu0 0.0
    %835 = vmatprep.subr.mxu0 0.0
    %836 = vmatpush1.msra.mxu0 0.0
    %837 = vmatprep.subr.mxu0 0.0
    %838 = vmatpush1.msra.mxu0 0.0
    %839 = vmatprep.subr.mxu0 0.0
    %840 = vmatpush1.msra.mxu0 0.0
    %841 = vmatprep.subr.mxu0 0.0
    %842 = vmatpush1.msra.mxu0 0.0
    %843 = vmatprep.subr.mxu0 0.0
    %844 = vmatpush1.msra.mxu0 0.0
    %845 = vmatprep.subr.mxu0 0.0
    %846 = vmatpush1.msra.mxu0 0.0
    %847 = vmatprep.subr.mxu0 0.0
    %848 = vmatpush1.msra.mxu0 0.0
    %849 = vmatprep.subr.mxu0 0.0
    %850 = vmatpush1.msra.mxu0 0.0
    %851 = vmatprep.subr.mxu0 0.0
    %852 = vmatpush1.msra.mxu0 0.0
    %853 = vmatprep.subr.mxu0 0.0
    %854 = vmatpush1.msra.mxu0 0.0
    %855 = vmatprep.subr.mxu0 0.0
    %856 = vmatpush1.msra.mxu0 0.0
    %857 = vmatprep.subr.mxu0 0.0
    %858 = vmatpush1.msra.mxu0 0.0
    %859 = vmatprep.subr.mxu0 0.0
    %860 = vmatpush1.msra.mxu0 0.0
    %861 = vmatprep.subr.mxu0 0.0
    %862 = vmatpush1.msra.mxu0 0.0
    %863 = vmatprep.subr.mxu0 0.0
    %864 = vmatpush1.msra.mxu0 0.0
    %865 = vmatprep.subr.mxu0 0.0
    %866 = vmatpush1.msra.mxu0 0.0
    %867 = vmatprep.subr.mxu0 0.0
    %868 = vmatpush1.msra.mxu0 0.0
    %869 = vmatprep.mubr.f32.mxu0 0.0
    %870 = vmatmul.mubr.f32.gmra.mrb[0].mxu0 %v803
    %v871 = vpop.f32.mrb[0].mxu0
    %v872 = vadd.f32 0.0, %v871
    %v873 = vpop.f32.mrb[0].mxu0
    %874 = vdwg.mxu0
    %v876 = vrot.slane %v872, 4
    %v878 = vadd.f32 %v149, %v876
    %v879 = vxor.u32 %v878, 2147483648
    %v880 = vmul.f32 %v879, 1.442695
    %v881 = vpow.pop %v880
    %v882 = vadd.f32 %v881, 1.0
    %v883 = vrcp.pop %v882
    %v884 = vmul.f32 1.0, %v883
    %v885 = vtanh.pop %v878
    %v887 = vrot.slane %v792, 6
    %v889 = vmul.f32 %v884, %v887
    %891 = vrot.lane.b32.xlu0 %v885, 64
    %v892 = vpop.permute.xlu0 %891
    %v894 = vmul.f32 %v884, %v892
    %896 = vrot.lane.b32.xlu0 %v894, 32
    %v897 = vpop.permute.xlu0 %896
    %v899 = vadd.f32 %v889, %v897
    %v900 = vtanh.pop %v899
    %902 = vrot.lane.b32.xlu0 %v900, 64
    %v903 = vpop.permute.xlu0 %902
    %v905 = vmul.f32 %v884, %v903
    %v907 = vrot.slane %v905, 4
    %908 = vrot.lane.b32.xlu0 %v907, 32
    %v909 = vpop.permute.xlu0 %908
    %v910 = vsel %vm168, %v909, 0
    %912 = vmatprep.subr.mxu0 0.0
    %913 = vmatpush1.msra.mxu0 %v164
    %914 = vmatprep.subr.mxu0 0.0
    %915 = vmatpush1.msra.mxu0 %v165
    %916 = vmatprep.subr.mxu0 0.0
    %917 = vmatpush1.msra.mxu0 %v166
    %918 = vmatprep.subr.mxu0 0.0
    %919 = vmatpush1.msra.mxu0 %v167
    %920 = vmatprep.subr.mxu0 0.0
    %921 = vmatpush1.msra.mxu0 0.0
    %922 = vmatprep.subr.mxu0 0.0
    %923 = vmatpush1.msra.mxu0 0.0
    %924 = vmatprep.subr.mxu0 0.0
    %925 = vmatpush1.msra.mxu0 0.0
    %926 = vmatprep.subr.mxu0 0.0
    %927 = vmatpush1.msra.mxu0 0.0
    %928 = vmatprep.subr.mxu0 0.0
    %929 = vmatpush1.msra.mxu0 0.0
    %930 = vmatprep.subr.mxu0 0.0
    %931 = vmatpush1.msra.mxu0 0.0
    %932 = vmatprep.subr.mxu0 0.0
    %933 = vmatpush1.msra.mxu0 0.0
    %934 = vmatprep.subr.mxu0 0.0
    %935 = vmatpush1.msra.mxu0 0.0
    %936 = vmatprep.subr.mxu0 0.0
    %937 = vmatpush1.msra.mxu0 0.0
    %938 = vmatprep.subr.mxu0 0.0
    %939 = vmatpush1.msra.mxu0 0.0
    %940 = vmatprep.subr.mxu0 0.0
    %941 = vmatpush1.msra.mxu0 0.0
    %942 = vmatprep.subr.mxu0 0.0
    %943 = vmatpush1.msra.mxu0 0.0
    %944 = vmatprep.subr.mxu0 0.0
    %945 = vmatpush1.msra.mxu0 0.0
    %946 = vmatprep.subr.mxu0 0.0
    %947 = vmatpush1.msra.mxu0 0.0
    %948 = vmatprep.subr.mxu0 0.0
    %949 = vmatpush1.msra.mxu0 0.0
    %950 = vmatprep.subr.mxu0 0.0
    %951 = vmatpush1.msra.mxu0 0.0
    %952 = vmatprep.subr.mxu0 0.0
    %953 = vmatpush1.msra.mxu0 0.0
    %954 = vmatprep.subr.mxu0 0.0
    %955 = vmatpush1.msra.mxu0 0.0
    %956 = vmatprep.subr.mxu0 0.0
    %957 = vmatpush1.msra.mxu0 0.0
    %958 = vmatprep.subr.mxu0 0.0
    %959 = vmatpush1.msra.mxu0 0.0
    %960 = vmatprep.subr.mxu0 0.0
    %961 = vmatpush1.msra.mxu0 0.0
    %962 = vmatprep.subr.mxu0 0.0
    %963 = vmatpush1.msra.mxu0 0.0
    %964 = vmatprep.subr.mxu0 0.0
    %965 = vmatpush1.msra.mxu0 0.0
    %966 = vmatprep.subr.mxu0 0.0
    %967 = vmatpush1.msra.mxu0 0.0
    %968 = vmatprep.subr.mxu0 0.0
    %969 = vmatpush1.msra.mxu0 0.0
    %970 = vmatprep.subr.mxu0 0.0
    %971 = vmatpush1.msra.mxu0 0.0
    %972 = vmatprep.subr.mxu0 0.0
    %973 = vmatpush1.msra.mxu0 0.0
    %974 = vmatprep.subr.mxu0 0.0
    %975 = vmatpush1.msra.mxu0 0.0
    %976 = vmatprep.mubr.f32.mxu0 0.0
    %977 = vmatmul.mubr.f32.gmra.mrb[0].mxu0 %v910
    %v978 = vpop.f32.mrb[0].mxu0
    %v979 = vadd.f32 0.0, %v978
    %v980 = vpop.f32.mrb[0].mxu0
    %981 = vdwg.mxu0
    %v983 = vrot.slane %v979, 2
    %v985 = vadd.f32 %v149, %v983
    %v986 = vxor.u32 %v985, 2147483648
    %v987 = vmul.f32 %v986, 1.442695
    %v988 = vpow.pop %v987
    %v989 = vadd.f32 %v988, 1.0
    %v990 = vrcp.pop %v989
    %v991 = vmul.f32 1.0, %v990
    %v992 = vtanh.pop %v985
    %v994 = vrot.slane %v899, 6
    %v996 = vmul.f32 %v991, %v994
    %998 = vrot.lane.b32.xlu0 %v992, 64
    %v999 = vpop.permute.xlu0 %998
    %v1001 = vmul.f32 %v991, %v999
    %1003 = vrot.lane.b32.xlu0 %v1001, 32
    %v1004 = vpop.permute.xlu0 %1003
    %v1006 = vadd.f32 %v996, %v1004
    %v1007 = vtanh.pop %v1006
    %1009 = vrot.lane.b32.xlu0 %v1007, 64
    %v1010 = vpop.permute.xlu0 %1009
    %v1012 = vmul.f32 %v991, %v1010
    %v1013 = vld [vmem:[#allocation5] sm:$0xff]
    %v1014 = vld [vmem:[#allocation5 + $0x8] sm:$0xff]
    %v1015 = vld [vmem:[#allocation5 + $0x10] sm:$0xff]
    %v1016 = vld [vmem:[#allocation5 + $0x18] sm:$0xff]
    %v1017 = vld [vmem:[%s7] sm:$0x1]
    %v1019 = vlaneseq
    %v1020 = vshrl.u32 %v1019, 7
    %v1021 = vsub.s32 0, %v1020
    %v1022 = vrot.slane %v1017, %v1021
    %v1025 = vrot.slane %v1012, 6
    %1026 = vrot.lane.b32.xlu0 %v1025, 32
    %v1027 = vpop.permute.xlu0 %1026
    %v1028 = vsel %vm168, %v1027, 0
    %1030 = vmatprep.subr.mxu0 0.0
    %1031 = vmatpush1.msra.mxu0 %v1013
    %1032 = vmatprep.subr.mxu0 0.0
    %1033 = vmatpush1.msra.mxu0 %v1014
    %1034 = vmatprep.subr.mxu0 0.0
    %1035 = vmatpush1.msra.mxu0 %v1015
    %1036 = vmatprep.subr.mxu0 0.0
    %1037 = vmatpush1.msra.mxu0 %v1016
    %1038 = vmatprep.subr.mxu0 0.0
    %1039 = vmatpush1.msra.mxu0 0.0
    %1040 = vmatprep.subr.mxu0 0.0
    %1041 = vmatpush1.msra.mxu0 0.0
    %1042 = vmatprep.subr.mxu0 0.0
    %1043 = vmatpush1.msra.mxu0 0.0
    %1044 = vmatprep.subr.mxu0 0.0
    %1045 = vmatpush1.msra.mxu0 0.0
    %1046 = vmatprep.subr.mxu0 0.0
    %1047 = vmatpush1.msra.mxu0 0.0
    %1048 = vmatprep.subr.mxu0 0.0
    %1049 = vmatpush1.msra.mxu0 0.0
    %1050 = vmatprep.subr.mxu0 0.0
    %1051 = vmatpush1.msra.mxu0 0.0
    %1052 = vmatprep.subr.mxu0 0.0
    %1053 = vmatpush1.msra.mxu0 0.0
    %1054 = vmatprep.subr.mxu0 0.0
    %1055 = vmatpush1.msra.mxu0 0.0
    %1056 = vmatprep.subr.mxu0 0.0
    %1057 = vmatpush1.msra.mxu0 0.0
    %1058 = vmatprep.subr.mxu0 0.0
    %1059 = vmatpush1.msra.mxu0 0.0
    %1060 = vmatprep.subr.mxu0 0.0
    %1061 = vmatpush1.msra.mxu0 0.0
    %1062 = vmatprep.subr.mxu0 0.0
    %1063 = vmatpush1.msra.mxu0 0.0
    %1064 = vmatprep.subr.mxu0 0.0
    %1065 = vmatpush1.msra.mxu0 0.0
    %1066 = vmatprep.subr.mxu0 0.0
    %1067 = vmatpush1.msra.mxu0 0.0
    %1068 = vmatprep.subr.mxu0 0.0
    %1069 = vmatpush1.msra.mxu0 0.0
    %1070 = vmatprep.subr.mxu0 0.0
    %1071 = vmatpush1.msra.mxu0 0.0
    %1072 = vmatprep.subr.mxu0 0.0
    %1073 = vmatpush1.msra.mxu0 0.0
    %1074 = vmatprep.subr.mxu0 0.0
    %1075 = vmatpush1.msra.mxu0 0.0
    %1076 = vmatprep.subr.mxu0 0.0
    %1077 = vmatpush1.msra.mxu0 0.0
    %1078 = vmatprep.subr.mxu0 0.0
    %1079 = vmatpush1.msra.mxu0 0.0
    %1080 = vmatprep.subr.mxu0 0.0
    %1081 = vmatpush1.msra.mxu0 0.0
    %1082 = vmatprep.subr.mxu0 0.0
    %1083 = vmatpush1.msra.mxu0 0.0
    %1084 = vmatprep.subr.mxu0 0.0
    %1085 = vmatpush1.msra.mxu0 0.0
    %1086 = vmatprep.subr.mxu0 0.0
    %1087 = vmatpush1.msra.mxu0 0.0
    %1088 = vmatprep.subr.mxu0 0.0
    %1089 = vmatpush1.msra.mxu0 0.0
    %1090 = vmatprep.subr.mxu0 0.0
    %1091 = vmatpush1.msra.mxu0 0.0
    %1092 = vmatprep.subr.mxu0 0.0
    %1093 = vmatpush1.msra.mxu0 0.0
    %1094 = vmatprep.mubr.f32.mxu0 0.0
    %1095 = vmatmul.mubr.f32.gmra.mrb[0].mxu0 %v1028
    %v1096 = vpop.f32.mrb[0].mxu0
    %v1097 = vadd.f32 %v1022, %v1096
    %v1098 = vpop.f32.mrb[0].mxu0
    %1099 = vdwg.mxu0
    %vm1100 = vcmask 205824
    %1101 = vst.msk [vmem:[#allocation7] sm:$0x3] %vm1100, %v1097
    // Predicated region
    $region42: #{tpu_custom_call.1} parent=1 // pred_check
      _
    $region43: #{tpu_custom_call.1} parent=1 // pred_check_branch
      %1103 = sbr.rel (0) target = $region45
    $region44: #{tpu_custom_call.1} parent=1 // pred_region
      %s1105 = ssub.s32 32, 32
      %1106 = vsyncadd [#allocation4], %s1105
      %s1108 = sshll.u32 [#allocation7], 4
      %s1109 = int_to_ptr.vmem [resolvable:$true] %s1108
      %1111 = dma.vmem_to_hbm [thread:$0]  %s1109, 32, %s8, [#allocation4]
    $region45: #{tpu_custom_call.1} parent=1 // pred_fallthru
      _
    // Predicated region
    $region46: #{tpu_custom_call.1} parent=1 // pred_check
      _
    $region47: #{tpu_custom_call.1} parent=1 // pred_check_branch
      %1113 = sbr.rel (0) target = $region49
    $region48: #{tpu_custom_call.1} parent=1 // pred_region
      %1114 = dma.done [#allocation4], 32
    $region49: #{tpu_custom_call.1} parent=1 // pred_fallthru
      _
    %1115 = vsyncpa [#allocation3], 1
    %1116 = vsyncpa [#allocation6], 1
    %1117 = vsyncpa [#allocation4], 1

</llo_original>
